<compile_context>
chip_gen: v5e
topology: v5e:2x2
jax: 0.10.0
libtpu: 0.0.40
codegen_flags: <defaults>
</compile_context>

<pallas_src>
import functools

import jax
import jax.numpy as jnp
from jax.experimental import pallas as pl
from jax.experimental.pallas import tpu as pltpu


def _round_up(a, m):
    return ((a + m - 1) // m) * m


def _cosine_xent_kernel(tgt_sm_ref,            # (B_pad,) int32, SMEM (scalar prefetch)
                        x_ref,                 # (TB, C_pad) f32 logits / embeddings
                        tgtv_ref,              # (TB, 1) int32 targets (for vreg mask)
                        emb_ref,               # (V, C_pad) f32 embedding table (resident)
                        out_ref,               # (1, 8, 128) f32 per-tile partials
                        emb_g_ref,             # scratch: (TB, C_pad) f32 gathered rows
                        *, tile_b, c_real, b_real, b_pad):
    i = pl.program_id(0)
    base = i * tile_b
    n_rows = emb_ref.shape[0]

    # ---- real gather: copy the TB target rows of the table into scratch ------------
    # (no one-hot matmul; targets come from SMEM, rows via dynamic sublane slices)
    @pl.loop(0, tile_b)
    def _(r):
        t = tgt_sm_ref[base + r]
        t = jnp.minimum(jnp.maximum(t, 0), n_rows - 1)   # avoid unchecked OOB VMEM read
        emb_g_ref[pl.ds(r, 1), :] = emb_ref[pl.ds(t, 1), :].astype(jnp.float32)

    x = x_ref[...].astype(jnp.float32)                   # (TB, C_pad)
    emb_t = emb_g_ref[...]                               # (TB, C_pad)
    tgt_col = tgtv_ref[...]                              # (TB, 1) int32
    lane = jax.lax.broadcasted_iota(jnp.int32, x.shape, 1)

    # ---- cosine term ----------------------------------------------------------------
    # cos = <x, e> * rsqrt(max(||x||^2, eps_n^2)) * rsqrt(max(||e||^2, eps_c^2))
    # (F.normalize eps=1e-12 folded in; ||normalize(x)|| ~ 1 term skipped)
    x_sq = jnp.sum(x * x, axis=1, keepdims=True)
    w12 = jnp.sum(x * emb_t, axis=1, keepdims=True)
    w2 = jnp.sum(emb_t * emb_t, axis=1, keepdims=True)
    inv_xn = jax.lax.rsqrt(jnp.maximum(x_sq, 1e-24))
    inv_en = jax.lax.rsqrt(jnp.maximum(w2, 1e-16))
    cos = w12 * inv_xn * inv_en                          # (TB, 1)

    # ---- cross-entropy term (stable log-sum-exp) -------------------------------------
    if c_real == x.shape[1]:
        logits = x
    else:                                                # mask padded lanes for the LSE
        logits = jnp.where(lane < c_real, x, -1e30)
    m = jnp.max(logits, axis=1, keepdims=True)
    lse = m + jnp.log(jnp.sum(jnp.exp(logits - m), axis=1, keepdims=True))
    picked = jnp.sum(jnp.where(lane == tgt_col, x, 0.0), axis=1, keepdims=True)
    xent_row = lse - picked                              # (TB, 1)

    # ---- mask padded batch rows, reduce to per-tile partial sums ----------------------
    if b_real != b_pad:
        row = jax.lax.broadcasted_iota(jnp.int32, (tile_b, 1), 0)
        valid = (base + row) < b_real
        cos = jnp.where(valid, cos, 0.0)
        xent_row = jnp.where(valid, xent_row, 0.0)

    cos_sum = jnp.sum(cos)
    xent_sum = jnp.sum(xent_row)

    # write partials into a full (8,128) tile (unmasked store); wrapper reduces them
    sub = jax.lax.broadcasted_iota(jnp.int32, (8, 128), 0)
    ln = jax.lax.broadcasted_iota(jnp.int32, (8, 128), 1)
    out_ref[0] = jnp.where((sub == 0) & (ln == 0), cos_sum,
                           jnp.where((sub == 0) & (ln == 1), xent_sum, 0.0))


def cosine_plus_xent_loss(inputs, target, emb_table, xent_weight=0.1, tile_b=512):
    """inputs: (B, C) float logits, target: (B,) int, emb_table: (V, C) with V == C."""
    B, C = inputs.shape
    V, Ce = emb_table.shape
    assert Ce == C, "embedding dim must equal the input feature dim"
    assert V == C, "num_classes must equal embedding dim (logits double as embeddings)"

    C_pad = _round_up(C, 128)                    # lane-dense blocks
    TB = min(_round_up(B, 8), _round_up(tile_b, 8))
    B_pad = _round_up(B, TB)
    num_tiles = B_pad // TB

    x_pad = jnp.zeros((B_pad, C_pad), jnp.float32).at[:B, :C].set(inputs.astype(jnp.float32))
    emb_pad = jnp.zeros((V, C_pad), jnp.float32).at[:, :C].set(emb_table.astype(jnp.float32))
    tgt1d = jnp.zeros((B_pad,), jnp.int32).at[:B].set(target.astype(jnp.int32))
    tgt2d = tgt1d.reshape(B_pad, 1)

    kernel = functools.partial(_cosine_xent_kernel,
                               tile_b=TB, c_real=C, b_real=B, b_pad=B_pad)

    grid_spec = pltpu.PrefetchScalarGridSpec(
        num_scalar_prefetch=1,                   # targets -> SMEM, drive the row gather
        grid=(num_tiles,),
        in_specs=[
            pl.BlockSpec((TB, C_pad), lambda i, *_: (i, 0)),   # logits tile
            pl.BlockSpec((TB, 1), lambda i, *_: (i, 0)),       # targets (vreg mask)
            pl.BlockSpec((V, C_pad), lambda i, *_: (0, 0)),    # table, resident (const map)
        ],
        out_specs=pl.BlockSpec((1, 8, 128), lambda i, *_: (i, 0, 0)),
        scratch_shapes=[pltpu.VMEM((TB, C_pad), jnp.float32)],
    )

    est_vmem = 4 * C_pad * (4 * TB + 2 * V) + (2 << 20)
    compiler_params = pltpu.CompilerParams(
        dimension_semantics=("parallel",),       # tiles independent -> megacore-shardable
        vmem_limit_bytes=int(min(max(est_vmem, 8 << 20), 48 << 20)),
    )
    cost = pl.CostEstimate(
        flops=int(14 * B_pad * C_pad),
        transcendentals=int(B_pad * C_pad + 4 * B_pad),
        bytes_accessed=int(4 * (B_pad * C_pad + V * C_pad + 2 * B_pad
                                + num_tiles * 8 * 128)),
    )

    parts = pl.pallas_call(
        kernel,
        out_shape=jax.ShapeDtypeStruct((num_tiles, 8, 128), jnp.float32),
        grid_spec=grid_spec,
        compiler_params=compiler_params,
        cost_estimate=cost,
    )(tgt1d, x_pad, tgt2d, emb_pad)

    inv_b = 1.0 / float(B)
    cos_total = jnp.sum(parts[:, 0, 0])
    xent_total = jnp.sum(parts[:, 0, 1])
    return (1.0 - cos_total * inv_b) + float(xent_weight) * (xent_total * inv_b)


if __name__ == "__main__":
    B = 16            # batch
    C = 32            # num_classes == embedding dim
    XENT_WEIGHT = 0.1

    key = jax.random.PRNGKey(0)
    k_in, k_tgt, k_emb = jax.random.split(key, 3)

    inputs = jax.random.normal(k_in, (B, C), dtype=jnp.float32)
    target = jax.random.randint(k_tgt, (B,), 0, C, dtype=jnp.int32)
    emb_table = jax.random.normal(k_emb, (C, C), dtype=jnp.float32)  # nn.Embedding(C, C) weight

    loss = cosine_plus_xent_loss(inputs, target, emb_table, xent_weight=XENT_WEIGHT)
    jax.block_until_ready(loss)

    # pure-JAX reference mirroring the PyTorch op chain
    def ref(x, t, tbl, xw):
        x = x.astype(jnp.float32)
        xn = x / jnp.maximum(jnp.linalg.norm(x, axis=1, keepdims=True), 1e-12)
        e = tbl[t]
        num = jnp.sum(xn * e, axis=1)
        den = (jnp.maximum(jnp.linalg.norm(xn, axis=1), 1e-8)
               * jnp.maximum(jnp.linalg.norm(e, axis=1), 1e-8))
        loss_cos = 1.0 - jnp.mean(num / den)
        lse = jax.scipy.special.logsumexp(x, axis=1)
        picked = jnp.take_along_axis(x, t[:, None], axis=1)[:, 0]
        loss_x = jnp.mean(lse - picked)
        return loss_cos + xw * loss_x

    expect = ref(inputs, target, emb_table, XENT_WEIGHT)
    assert jnp.allclose(loss, expect, rtol=1e-4, atol=1e-4), (float(loss), float(expect))
    print("KERNEL_OK")
</pallas_src>

<mosaic_0001>
module attributes {stable_mosaic.version = 11 : i64} {
  func.func @_cosine_xent_kernel(%arg0: i32, %arg1: memref<16xi32, #tpu.memory_space<smem>>, %arg2: memref<16x128xf32, #tpu.memory_space<vmem>>, %arg3: memref<16x1xi32, #tpu.memory_space<vmem>>, %arg4: memref<32x128xf32, #tpu.memory_space<vmem>>, %arg5: memref<1x8x128xf32, #tpu.memory_space<vmem>>, %arg6: memref<16x128xf32, #tpu.memory_space<vmem>>) attributes {dimension_semantics = [#tpu.dimension_semantics<parallel>], iteration_bounds = array<i64: 1>, scalar_prefetch = 1 : i64, scratch_operands = 1 : i64, tpu.core_type = #tpu.core_type<tc>, window_params = [{transform_indices = @transform_0, window_bounds = array<i64: 16, 128>}, {transform_indices = @transform_1, window_bounds = array<i64: 16, 1>}, {pipeline_mode = #tpu.pipeline_mode<synchronous>, transform_indices = @transform_2, window_bounds = array<i64: 32, 128>}, {transform_indices = @transform_3, window_bounds = array<i64: 1, 8, 128>}]} {
    %c16_i32 = arith.constant 16 : i32
    %0 = arith.muli %arg0, %c16_i32 : i32
    %c0_i32 = arith.constant 0 : i32
    %c16_i32_0 = arith.constant 16 : i32
    %1 = arith.addi %c0_i32, %c16_i32_0 : i32
    %c1_i32 = arith.constant 1 : i32
    scf.for %arg7 = %c0_i32 to %1 step %c1_i32  : i32 {
      %c1_i32_26 = arith.constant 1 : i32
      %71 = arith.muli %arg7, %c1_i32_26 : i32
      %c0_i32_27 = arith.constant 0 : i32
      %72 = arith.addi %c0_i32_27, %71 : i32
      %73 = arith.addi %0, %72 : i32
      %74 = arith.index_cast %73 : i32 to index
      %75 = memref.load %arg1[%74] : memref<16xi32, #tpu.memory_space<smem>>
      %c0_i32_28 = arith.constant 0 : i32
      %76 = arith.maxsi %75, %c0_i32_28 : i32
      %c31_i32 = arith.constant 31 : i32
      %77 = arith.minsi %76, %c31_i32 : i32
      %78 = arith.index_cast %77 : i32 to index
      %c0_29 = arith.constant 0 : index
      %79 = vector.load %arg4[%78, %c0_29] : memref<32x128xf32, #tpu.memory_space<vmem>>, vector<1x128xf32>
      %80 = arith.index_cast %72 : i32 to index
      %c0_30 = arith.constant 0 : index
      %81 = vector.load %arg6[%80, %c0_30] : memref<16x128xf32, #tpu.memory_space<vmem>>, vector<1x128xf32>
      tpu.vector_store %arg6[%80, %c0_30], %79 {strides = array<i32>} : memref<16x128xf32, #tpu.memory_space<vmem>>, vector<1x128xf32>,
    }
    %c16_i32_1 = arith.constant 16 : i32
    %c0 = arith.constant 0 : index
    %c0_2 = arith.constant 0 : index
    %2 = vector.load %arg2[%c0, %c0_2] : memref<16x128xf32, #tpu.memory_space<vmem>>, vector<16x128xf32>
    %c0_3 = arith.constant 0 : index
    %c0_4 = arith.constant 0 : index
    %3 = vector.load %arg6[%c0_3, %c0_4] : memref<16x128xf32, #tpu.memory_space<vmem>>, vector<16x128xf32>
    %c0_5 = arith.constant 0 : index
    %c0_6 = arith.constant 0 : index
    %4 = vector.load %arg3[%c0_5, %c0_6] : memref<16x1xi32, #tpu.memory_space<vmem>>, vector<16x1xi32>
    %5 = tpu.iota {dimensions = array<i32: 1>} : vector<16x128xi32>
    %6 = arith.mulf %2, %2 : vector<16x128xf32>
    %cst = arith.constant dense<0.000000e+00> : vector<16xf32>
    %7 = vector.multi_reduction <add>, %6, %cst [1] : vector<16x128xf32> to vector<16xf32>
    %8 = vector.shape_cast %7 : vector<16xf32> to vector<16x1xf32>
    %9 = arith.mulf %2, %3 : vector<16x128xf32>
    %cst_7 = arith.constant dense<0.000000e+00> : vector<16xf32>
    %10 = vector.multi_reduction <add>, %9, %cst_7 [1] : vector<16x128xf32> to vector<16xf32>
    %11 = vector.shape_cast %10 : vector<16xf32> to vector<16x1xf32>
    %12 = arith.mulf %3, %3 : vector<16x128xf32>
    %cst_8 = arith.constant dense<0.000000e+00> : vector<16xf32>
    %13 = vector.multi_reduction <add>, %12, %cst_8 [1] : vector<16x128xf32> to vector<16xf32>
    %14 = vector.shape_cast %13 : vector<16xf32> to vector<16x1xf32>
    %cst_9 = arith.constant 1.000000e-24 : f32
    %15 = vector.broadcast %cst_9 : f32 to vector<16x1xf32>
    %16 = arith.maximumf %8, %15 : vector<16x1xf32>
    %17 = math.rsqrt %16 : vector<16x1xf32>
    %cst_10 = arith.constant 1.000000e-16 : f32
    %18 = vector.broadcast %cst_10 : f32 to vector<16x1xf32>
    %19 = arith.maximumf %14, %18 : vector<16x1xf32>
    %20 = math.rsqrt %19 : vector<16x1xf32>
    %21 = arith.mulf %11, %17 : vector<16x1xf32>
    %22 = arith.mulf %21, %20 : vector<16x1xf32>
    %c32_i32 = arith.constant 32 : i32
    %23 = vector.broadcast %c32_i32 : i32 to vector<16x128xi32>
    %24 = arith.cmpi slt, %5, %23 : vector<16x128xi32>
    %cst_11 = arith.constant -1.000000e+30 : f32
    %25 = vector.broadcast %cst_11 : f32 to vector<16x128xf32>
    %26 = arith.select %24, %2, %25 : vector<16x128xi1>, vector<16x128xf32>
    %cst_12 = arith.constant dense<0xFF800000> : vector<16xf32>
    %27 = vector.multi_reduction <maximumf>, %26, %cst_12 [1] : vector<16x128xf32> to vector<16xf32>
    %28 = vector.shape_cast %27 : vector<16xf32> to vector<16x1xf32>
    %29 = vector.broadcast %28 : vector<16x1xf32> to vector<16x128xf32>
    %30 = arith.subf %26, %29 : vector<16x128xf32>
    %31 = math.exp %30 : vector<16x128xf32>
    %cst_13 = arith.constant dense<0.000000e+00> : vector<16xf32>
    %32 = vector.multi_reduction <add>, %31, %cst_13 [1] : vector<16x128xf32> to vector<16xf32>
    %33 = vector.shape_cast %32 : vector<16xf32> to vector<16x1xf32>
    %34 = math.log %33 : vector<16x1xf32>
    %35 = arith.addf %28, %34 : vector<16x1xf32>
    %36 = vector.broadcast %4 : vector<16x1xi32> to vector<16x128xi32>
    %37 = arith.cmpi eq, %5, %36 : vector<16x128xi32>
    %cst_14 = arith.constant 0.000000e+00 : f32
    %38 = vector.broadcast %cst_14 : f32 to vector<16x128xf32>
    %39 = arith.select %37, %2, %38 : vector<16x128xi1>, vector<16x128xf32>
    %cst_15 = arith.constant dense<0.000000e+00> : vector<16xf32>
    %40 = vector.multi_reduction <add>, %39, %cst_15 [1] : vector<16x128xf32> to vector<16xf32>
    %41 = vector.shape_cast %40 : vector<16xf32> to vector<16x1xf32>
    %42 = arith.subf %35, %41 : vector<16x1xf32>
    %43 = vector.shape_cast %22 : vector<16x1xf32> to vector<1x16x1xf32>
    %cst_16 = arith.constant dense<0.000000e+00> : vector<1xf32>
    %44 = vector.multi_reduction <add>, %43, %cst_16 [1, 2] : vector<1x16x1xf32> to vector<1xf32>
    %45 = vector.shape_cast %44 : vector<1xf32> to vector<1x1x1xf32>
    %46 = vector.extract %45[0, 0, 0] : f32 from vector<1x1x1xf32>
    %47 = vector.shape_cast %42 : vector<16x1xf32> to vector<1x16x1xf32>
    %cst_17 = arith.constant dense<0.000000e+00> : vector<1xf32>
    %48 = vector.multi_reduction <add>, %47, %cst_17 [1, 2] : vector<1x16x1xf32> to vector<1xf32>
    %49 = vector.shape_cast %48 : vector<1xf32> to vector<1x1x1xf32>
    %50 = vector.extract %49[0, 0, 0] : f32 from vector<1x1x1xf32>
    %51 = tpu.iota {dimensions = array<i32: 0>} : vector<8x128xi32>
    %52 = tpu.iota {dimensions = array<i32: 1>} : vector<8x128xi32>
    %c0_i32_18 = arith.constant 0 : i32
    %53 = vector.broadcast %c0_i32_18 : i32 to vector<8x128xi32>
    %54 = arith.cmpi eq, %51, %53 : vector<8x128xi32>
    %c0_i32_19 = arith.constant 0 : i32
    %55 = vector.broadcast %c0_i32_19 : i32 to vector<8x128xi32>
    %56 = arith.cmpi eq, %52, %55 : vector<8x128xi32>
    %57 = arith.andi %54, %56 : vector<8x128xi1>
    %c0_i32_20 = arith.constant 0 : i32
    %58 = vector.broadcast %c0_i32_20 : i32 to vector<8x128xi32>
    %59 = arith.cmpi eq, %51, %58 : vector<8x128xi32>
    %c1_i32_21 = arith.constant 1 : i32
    %60 = vector.broadcast %c1_i32_21 : i32 to vector<8x128xi32>
    %61 = arith.cmpi eq, %52, %60 : vector<8x128xi32>
    %62 = arith.andi %59, %61 : vector<8x128xi1>
    %cst_22 = arith.constant 0.000000e+00 : f32
    %63 = vector.broadcast %50 : f32 to vector<8x128xf32>
    %64 = vector.broadcast %cst_22 : f32 to vector<8x128xf32>
    %65 = arith.select %62, %63, %64 : vector<8x128xi1>, vector<8x128xf32>
    %66 = vector.broadcast %46 : f32 to vector<8x128xf32>
    %67 = arith.select %57, %66, %65 : vector<8x128xi1>, vector<8x128xf32>
    %c0_23 = arith.constant 0 : index
    %c0_24 = arith.constant 0 : index
    %c0_25 = arith.constant 0 : index
    %68 = vector.load %arg5[%c0_23, %c0_24, %c0_25] : memref<1x8x128xf32, #tpu.memory_space<vmem>>, vector<1x8x128xf32>
    %69 = vector.shape_cast %68 : vector<1x8x128xf32> to vector<8x128xf32>
    %70 = vector.shape_cast %67 : vector<8x128xf32> to vector<1x8x128xf32>
    tpu.vector_store %arg5[%c0_23, %c0_24, %c0_25], %70 {strides = array<i32>} : memref<1x8x128xf32, #tpu.memory_space<vmem>>, vector<1x8x128xf32>,
    return
  }
  func.func @transform_0(%arg0: i32, %arg1: memref<16xi32, #tpu.memory_space<smem>>) -> (i32, i32) {
    %c0_i32 = arith.constant 0 : i32
    %c0_i32_0 = arith.constant 0 : i32
    return %arg0, %c0_i32 : i32, i32
  }
  func.func @transform_1(%arg0: i32, %arg1: memref<16xi32, #tpu.memory_space<smem>>) -> (i32, i32) {
    %c0_i32 = arith.constant 0 : i32
    %c0_i32_0 = arith.constant 0 : i32
    return %arg0, %c0_i32 : i32, i32
  }
  func.func @transform_2(%arg0: i32, %arg1: memref<16xi32, #tpu.memory_space<smem>>) -> (i32, i32) {
    %c0_i32 = arith.constant 0 : i32
    %c0_i32_0 = arith.constant 0 : i32
    %c0_i32_1 = arith.constant 0 : i32
    return %c0_i32, %c0_i32_0 : i32, i32
  }
  func.func @transform_3(%arg0: i32, %arg1: memref<16xi32, #tpu.memory_space<smem>>) -> (i32, i32, i32) {
    %c0_i32 = arith.constant 0 : i32
    %c0_i32_0 = arith.constant 0 : i32
    %c0_i32_1 = arith.constant 0 : i32
    return %arg0, %c0_i32, %c0_i32_0 : i32, i32, i32
  }
}

</mosaic_0001>

<llo_original>
// kernel: tpu_custom_call.1
$region0: #{tpu_custom_call.1}
  #allocation0 [shape = 'u32[]', space=smem, size = 0x4, offset = 0x4, fixed_abs, tag = 'smem constant byte address 0x4 - core index']
  #allocation1 [shape = 'u32[72,128]{1,0:T(1,128)}', space=vmem, size = 0x9000, scoped, tag = 'internal scratch']
  #allocation2 [shape = 'f32[16,128]{1,0:T(8,128)}', space=vmem, size = 0x2000, scoped, tag = 'scratch operand']
  #allocation3 [shape = 's32[1]{0}', space=sflag, size = 0x4, scoped, tag = 'scoped memory for tpu_custom_call.1']
  #allocation4 [shape = 'u8[512]{0}', space=smem, size = 0x200, scoped, tag = 'prefetched SMEM operand 0']
  %s0 = inlined_call_operand.vmem [shape: s32[16], index: 0, kind: input, shape index: {}]
  %s1 = inlined_call_operand.vmem [shape: f32[16,128], index: 1, kind: input, shape index: {}]
  %s2 = inlined_call_operand.vmem [shape: s32[16,1], index: 2, kind: input, shape index: {}]
  %s3 = inlined_call_operand.hbm [shape: f32[32,128], index: 3, kind: input, shape index: {}]
  %s4 = inlined_call_operand.hbm [shape: f32[1,8,128], index: 4, kind: output, shape index: {}]
  %s5 = sld [smem:[#allocation0]]
  $region33: #{tpu_custom_call.1} parent=0
    _
  %s7 = ssub.s32 1, %s5
  %s8 = scalar_select 0, %s7, %s5
  %s10 = sshll.u32 %s0, 4
  %s11 = int_to_ptr.vmem [resolvable:$true] %s10
  %13 = dma.vmem_to_smem %s11, 16, [#allocation4], [#allocation3]
  %15 = dma.done [#allocation3], 16
  %16 = sfence
  $region1: #{tpu_custom_call.1} parent=0
    #allocation5 [shape = 'u8[16384]{0}', space=vmem, size = 0x4000, scoped, tag = 'input window, operand 3, single buffered']
    #allocation6 [shape = 's32[1]{0}', space=sflag, size = 0x4, scoped, tag = 'scoped memory for tpu_custom_call.1']
    #allocation7 [shape = 's32[1]{0}', space=sflag, size = 0x4, scoped, tag = 'scoped memory for tpu_custom_call.1']
    #allocation8 [shape = 'u8[4096]{0}', space=vmem, size = 0x1000, scoped, tag = 'output window, operand 0, single buffered']
    %17 = vsyncpa [#allocation6], 0
    %18 = vsyncpa [#allocation7], 0
    // Predicated region
    $region2: #{tpu_custom_call.1} parent=1 // pred_check
      _
    $region3: #{tpu_custom_call.1} parent=1 // pred_check_branch
      %20 = sbr.rel (0) target = $region5
    $region4: #{tpu_custom_call.1} parent=1 // pred_region
      _
    $region5: #{tpu_custom_call.1} parent=1 // pred_fallthru
      _
    // Predicated region
    $region6: #{tpu_custom_call.1} parent=1 // pred_check
      _
    $region7: #{tpu_custom_call.1} parent=1 // pred_check_branch
      %22 = sbr.rel (0) target = $region9
    $region8: #{tpu_custom_call.1} parent=1 // pred_region
      _
    $region9: #{tpu_custom_call.1} parent=1 // pred_fallthru
      _
    // Predicated region
    $region10: #{tpu_custom_call.1} parent=1 // pred_check
      _
    $region11: #{tpu_custom_call.1} parent=1 // pred_check_branch
      %24 = sbr.rel (0) target = $region13
    $region12: #{tpu_custom_call.1} parent=1 // pred_region
      %26 = vsyncadd [#allocation6], 0
      %s27 = sshll.u32 %s3, 4
      %s28 = int_to_ptr.hbm [resolvable:$true] %s27
      %s29 = sshll.u32 [#allocation5], 4
      %s30 = int_to_ptr.vmem [resolvable:$true] %s29
      %35 = dma.hbm_to_vmem [thread:$0]  %s28, 512, %s30, [#allocation6], 128, 128, 8
    $region13: #{tpu_custom_call.1} parent=1 // pred_fallthru
      _
    // Predicated region
    $region14: #{tpu_custom_call.1} parent=1 // pred_check
      _
    $region15: #{tpu_custom_call.1} parent=1 // pred_check_branch
      %37 = sbr.rel (0) target = $region17
    $region16: #{tpu_custom_call.1} parent=1 // pred_region
      %39 = dma.done [#allocation6], 512
    $region17: #{tpu_custom_call.1} parent=1 // pred_fallthru
      _
    %s40 = smul.u32 0, 16
    loop: start=0, step=1, limit=16
    $region18: #{tpu_custom_call.1} parent=1 // loop_pre_header
      _
    $region19: #{tpu_custom_call.1} parent=1 // loop_header
      %s42 = sphi 0, %s46
      %p43 = scmp.ge.s32.totalorder %s42, 16
    $region20: #{tpu_custom_call.1} parent=1 // loop_header_branch
      %45 = sbr.rel (%p43) target = $region24
    $region21: #{tpu_custom_call.1} parent=1 // loop_body
      %s47 = sadd.s32 %s40, %s42
      %s48 = sld [smem:[#allocation4 + %s47]]
      %p49 = scmp.gt.s32.totalorder %s48, 0
      %s50 = scalar_select %p49, %s48, 0
      %p51 = scmp.lt.s32.totalorder %s50, 31
      %s52 = scalar_select %p51, %s50, 31
      %s53 = scalar_lea.vmem [#allocation5], %s52
      %v54 = vld [vmem:[%s53] sm:$0x1]
      %s55 = scalar_lea.vmem [#allocation2], %s42
      %56 = vst [vmem:[%s55] sm:$0x1] %v54
    $region22: #{tpu_custom_call.1} parent=1 // loop_footer
      %s46 = sadd.s32 1, %s42
    $region23: #{tpu_custom_call.1} parent=1 // loop_footer_branch
      %41 = sbr.rel target = $region19
    $region24: #{tpu_custom_call.1} parent=1 // loop_exit
      _
    %v57 = vld [vmem:[%s1] sm:$0xff]
    %v58 = vld [vmem:[%s1 + $0x8] sm:$0xff]
    %v59 = vld [vmem:[#allocation2] sm:$0xff]
    %v60 = vld [vmem:[#allocation2 + $0x8] sm:$0xff]
    %v61 = vld [vmem:[%s2] sm:$0xff]
    %v62 = vld [vmem:[%s2 + $0x8] sm:$0xff]
    %v63 = vlaneseq
    %v64 = vand.u32 %v63, 127
    %v65 = vmul.f32 %v57, %v57
    %v66 = vmul.f32 %v58, %v58
    %67 = vadd.xlane.f32.xlu0 %v65
    %v68 = vpop.xlane.xlu0 %67
    %69 = vadd.xlane.f32.xlu0 %v66
    %v70 = vpop.xlane.xlu0 %69
    %v71 = vmul.f32 %v57, %v59
    %v72 = vmul.f32 %v58, %v60
    %73 = vadd.xlane.f32.xlu0 %v71
    %v74 = vpop.xlane.xlu0 %73
    %75 = vadd.xlane.f32.xlu0 %v72
    %v76 = vpop.xlane.xlu0 %75
    %v77 = vmul.f32 %v59, %v59
    %v78 = vmul.f32 %v60, %v60
    %79 = vadd.xlane.f32.xlu0 %v77
    %v80 = vpop.xlane.xlu0 %79
    %81 = vadd.xlane.f32.xlu0 %v78
    %v82 = vpop.xlane.xlu0 %81
    %v83 = vmax.f32 %v68, 1e-24
    %v84 = vmax.f32 %v70, 1e-24
    %v85 = vrsqrt.pop %v83
    %v86 = vmul.f32 %v85, %v83
    %v87 = vmul.f32 %v86, %v85
    %v88 = vmul.f32 0.5, %v87
    %v89 = vsub.f32 1.5, %v88
    %v90 = vmul.f32 %v85, %v89
    %vm91 = vweird.f32 %v83
    %vm92 = vweird.f32 %v85
    %vm93 = vmor %vm91, %vm92
    %v94 = vsel %vm93, %v85, %v90
    %v95 = vrsqrt.pop %v84
    %v96 = vmul.f32 %v95, %v84
    %v97 = vmul.f32 %v96, %v95
    %v98 = vmul.f32 0.5, %v97
    %v99 = vsub.f32 1.5, %v98
    %v100 = vmul.f32 %v95, %v99
    %vm101 = vweird.f32 %v84
    %vm102 = vweird.f32 %v95
    %vm103 = vmor %vm101, %vm102
    %v104 = vsel %vm103, %v95, %v100
    %v105 = vmax.f32 %v80, 1e-16
    %v106 = vmax.f32 %v82, 1e-16
    %v107 = vrsqrt.pop %v105
    %v108 = vmul.f32 %v107, %v105
    %v109 = vmul.f32 %v108, %v107
    %v110 = vmul.f32 0.5, %v109
    %v111 = vsub.f32 1.5, %v110
    %v112 = vmul.f32 %v107, %v111
    %vm113 = vweird.f32 %v105
    %vm114 = vweird.f32 %v107
    %vm115 = vmor %vm113, %vm114
    %v116 = vsel %vm115, %v107, %v112
    %v117 = vrsqrt.pop %v106
    %v118 = vmul.f32 %v117, %v106
    %v119 = vmul.f32 %v118, %v117
    %v120 = vmul.f32 0.5, %v119
    %v121 = vsub.f32 1.5, %v120
    %v122 = vmul.f32 %v117, %v121
    %vm123 = vweird.f32 %v106
    %vm124 = vweird.f32 %v117
    %vm125 = vmor %vm123, %vm124
    %v126 = vsel %vm125, %v117, %v122
    %v127 = vmul.f32 %v74, %v94
    %v128 = vmul.f32 %v76, %v104
    %v129 = vmul.f32 %v127, %v116
    %v130 = vmul.f32 %v128, %v126
    %vm131 = vcmp.lt.s32.totalorder %v64, 32
    %v132 = vsel %vm131, %v57, -1e+30
    %v133 = vsel %vm131, %v58, -1e+30
    %134 = vmax.xlane.f32.xlu0 %v132
    %v135 = vpop.xlane.xlu0 %134
    %136 = vmax.xlane.f32.xlu0 %v133
    %v137 = vpop.xlane.xlu0 %136
    %v138 = vsub.f32 %v132, %v135
    %v139 = vsub.f32 %v133, %v137
    %v140 = vmul.f32 %v138, 1.442695
    %v141 = vpow.pop %v140
    %v142 = vmul.f32 %v139, 1.442695
    %v143 = vpow.pop %v142
    %144 = vadd.xlane.f32.xlu0 %v141
    %v145 = vpop.xlane.xlu0 %144
    %146 = vadd.xlane.f32.xlu0 %v143
    %v147 = vpop.xlane.xlu0 %146
    %v148 = vlog2.pop %v145
    %v149 = vmul.f32 %v148, 0.6931472
    %v150 = vlog2.pop %v147
    %v151 = vmul.f32 %v150, 0.6931472
    %v152 = vadd.f32 %v135, %v149
    %v153 = vadd.f32 %v137, %v151
    %154 = vset.pattern.permute.xlu0 0
    %155 = vperm.xlu0 %154, %v61
    %v156 = vpop.permute.xlu0 %155
    %157 = vset.pattern.permute.xlu0 0
    %158 = vperm.xlu0 %157, %v62
    %v159 = vpop.permute.xlu0 %158
    %vm160 = vcmp.eq.s32.totalorder %v64, %v156
    %vm161 = vcmp.eq.s32.totalorder %v64, %v159
    %v162 = vsel %vm160, %v57, 0.0
    %v163 = vsel %vm161, %v58, 0.0
    %164 = vadd.xlane.f32.xlu0 %v162
    %v165 = vpop.xlane.xlu0 %164
    %166 = vadd.xlane.f32.xlu0 %v163
    %v167 = vpop.xlane.xlu0 %166
    %v168 = vsub.f32 %v152, %v165
    %v169 = vsub.f32 %v153, %v167
    %vm170 = vcmask 7168
    %v171 = vsel %vm170, %v129, 0.0
    %v172 = vsel %vm170, %v130, 0.0
    %v173 = vadd.f32 %v171, %v172
    %174 = vadd.xlane.f32.xlu0 %v173
    %v175 = vpop.xlane.xlu0 %174
    %v176 = vrot.slane %v175, 4
    %v177 = vadd.f32 %v175, %v176
    %v178 = vrot.slane %v177, 2
    %v179 = vadd.f32 %v177, %v178
    %v180 = vrot.slane %v179, 1
    %v181 = vadd.f32 %v179, %v180
    %s182 = vtos %v181
    %v183 = vsel %vm170, %v168, 0.0
    %v184 = vsel %vm170, %v169, 0.0
    %v185 = vadd.f32 %v183, %v184
    %186 = vadd.xlane.f32.xlu0 %v185
    %v187 = vpop.xlane.xlu0 %186
    %v188 = vrot.slane %v187, 4
    %v189 = vadd.f32 %v187, %v188
    %v190 = vrot.slane %v189, 2
    %v191 = vadd.f32 %v189, %v190
    %v192 = vrot.slane %v191, 1
    %v193 = vadd.f32 %v191, %v192
    %s194 = vtos %v193
    %v195 = vlaneseq
    %v196 = vshrl.u32 %v195, 7
    %vm197 = vcmp.eq.s32.totalorder %v196, 0
    %vm198 = vcmp.eq.s32.totalorder %v64, 0
    %vm199 = vmand %vm197, %vm198
    %vm200 = vcmp.eq.s32.totalorder %v64, 1
    %vm201 = vmand %vm197, %vm200
    %v202 = vstv %s194
    %v203 = vsel %vm201, %v202, 0.0
    %v204 = vstv %s182
    %v205 = vsel %vm199, %v204, %v203
    %206 = vst [vmem:[#allocation8] sm:$0xff] %v205
    // Predicated region
    $region25: #{tpu_custom_call.1} parent=1 // pred_check
      _
    $region26: #{tpu_custom_call.1} parent=1 // pred_check_branch
      %208 = sbr.rel (0) target = $region28
    $region27: #{tpu_custom_call.1} parent=1 // pred_region
      %210 = vsyncadd [#allocation7], 0
      %s212 = sshll.u32 [#allocation8], 4
      %s213 = int_to_ptr.vmem [resolvable:$true] %s212
      %s214 = sshll.u32 %s4, 4
      %s215 = int_to_ptr.hbm [resolvable:$true] %s214
      %217 = dma.vmem_to_hbm [thread:$0]  %s213, 128, %s215, [#allocation7]
    $region28: #{tpu_custom_call.1} parent=1 // pred_fallthru
      _
    // Predicated region
    $region29: #{tpu_custom_call.1} parent=1 // pred_check
      _
    $region30: #{tpu_custom_call.1} parent=1 // pred_check_branch
      %219 = sbr.rel (0) target = $region32
    $region31: #{tpu_custom_call.1} parent=1 // pred_region
      %221 = dma.done [#allocation7], 128
    $region32: #{tpu_custom_call.1} parent=1 // pred_fallthru
      _
    %222 = vsyncpa [#allocation6], 1
    %223 = vsyncpa [#allocation7], 1

</llo_original>
